<compile_context>
chip_gen: v7x
topology: tpu7x:2x2x1
jax: 0.10.0
libtpu: 0.0.40
codegen_flags: <defaults>
</compile_context>

<pallas_src>
import functools

import jax
import jax.numpy as jnp
from jax.experimental import pallas as pl
from jax.experimental.pallas import tpu as pltpu

_LANE = 128
_MIB = 1024 * 1024


# --------------------------------------------------------------------------- #
# Kernel
# --------------------------------------------------------------------------- #
def _lora_kernel(x_ref, a_ref, b_ref, o_ref, xa_ref, *, scale):
    """One (tb, tn) output tile of x @ (A @ B * scale).

    xa_ref is a (tb, r) f32 VMEM scratch holding (x_tile @ A) * scale; it is
    computed once per batch tile (dim_out-tile index j == 0) and reused for every
    dim_out tile of that batch tile.
    """
    @pl.when(pl.program_id(1) == 0)
    def _():
        xa = jnp.dot(x_ref[...], a_ref[...], preferred_element_type=jnp.float32)
        if scale != 1.0:  # trace-time skip for the default alpha == r case
            xa = xa * scale
        xa_ref[...] = xa

    out = jnp.dot(xa_ref[...].astype(b_ref.dtype), b_ref[...],
                  preferred_element_type=jnp.float32)
    o_ref[...] = out.astype(o_ref.dtype)


# --------------------------------------------------------------------------- #
# Sizing helpers
# --------------------------------------------------------------------------- #
def _sublane_align(dtype):
    """Batch-tile sublane alignment: 8 rows (f32) / 16 (bf16) / 32 (int8, fp8)."""
    return {4: 8, 2: 16, 1: 32}.get(jnp.dtype(dtype).itemsize, 8)


def _round_up(x, m):
    return ((x + m - 1) // m) * m


def _vmem_capacity_bytes():
    """Per-TensorCore VMEM capacity; conservative fallback if the query fails."""
    try:
        cap = int(pltpu.get_tpu_info().vmem_capacity_bytes)
        if cap >= 16 * _MIB:
            return cap
    except Exception:
        pass
    return 64 * _MIB  # v7x per-TC size; safe lower bound for v5e/v6e as well


@functools.lru_cache(maxsize=None)
def _single_buffering_supported():
    """Probe whether this JAX/Mosaic supports pipeline_mode=pl.Buffered(1)."""
    if not hasattr(pl, "Buffered"):
        return False
    try:
        def _probe_kernel(x_ref, o_ref):
            o_ref[...] = x_ref[...]

        spec = pl.BlockSpec((8, _LANE), lambda i: (0, 0),
                            pipeline_mode=pl.Buffered(1))
        probe = pl.pallas_call(
            _probe_kernel,
            out_shape=jax.ShapeDtypeStruct((16, _LANE), jnp.float32),
            grid=(2,),
            in_specs=[spec],
            out_specs=pl.BlockSpec((8, _LANE), lambda i: (i, 0)),
        )
        jax.block_until_ready(probe(jnp.zeros((8, _LANE), jnp.float32)))
        return True
    except Exception:
        return False


def _resident_a_spec(dim, r):
    """A never changes across the grid; single-buffer it when supported."""
    index_map = lambda i, j: (0, 0)
    if _single_buffering_supported():
        return pl.BlockSpec((dim, r), index_map,
                            pipeline_mode=pl.Buffered(1)), 1
    return pl.BlockSpec((dim, r), index_map), 2


def _working_set_bytes(tb, tn, dim, r, itemsize, a_buffers):
    """Physical (lane/sublane padded) VMEM footprint of the pipeline buffers."""
    a_bytes = a_buffers * dim * _round_up(r, _LANE) * itemsize  # r pads to 128 lanes
    b_bytes = 2 * max(r, 8) * _round_up(tn, _LANE) * itemsize
    x_bytes = 2 * tb * _round_up(dim, _LANE) * itemsize
    o_bytes = 2 * tb * _round_up(tn, _LANE) * itemsize
    xa_bytes = tb * _round_up(r, _LANE) * 4  # f32 scratch
    return a_bytes + b_bytes + x_bytes + o_bytes + xa_bytes


def _pick_tiles(batch, dim, dim_out, r, itemsize, sub_align,
                tb_target, tn_target, budget, a_buffers):
    tb = batch if batch <= tb_target else max(
        sub_align, (tb_target // sub_align) * sub_align)
    tn = dim_out if dim_out <= tn_target else max(
        _LANE, (tn_target // _LANE) * _LANE)
    # Give megacore at least two batch tiles to shard when batch is big enough.
    if batch >= 2 * sub_align:
        tb = min(tb, _round_up((batch + 1) // 2, sub_align))
    # Shrink until the working set fits the per-chip VMEM budget.
    while _working_set_bytes(tb, tn, dim, r, itemsize, a_buffers) > budget:
        if tb > sub_align:
            tb = max(sub_align, ((tb // 2) // sub_align) * sub_align)
        elif tn > _LANE:
            tn = max(_LANE, ((tn // 2) // _LANE) * _LANE)
        else:
            break
    return tb, tn


# --------------------------------------------------------------------------- #
# Wrapper
# --------------------------------------------------------------------------- #
def lora_forward(x, A, B, *, scale, tb_target=256, tn_target=1024):
    """Pallas LoRA forward: x @ (A @ B * scale).

    x: (batch, dim), A: (dim, r), B: (r, dim_out) -> (batch, dim_out).
    Pass bf16 x/A/B for halved streaming bytes on all generations; the MXU still
    accumulates in f32 and the output keeps x.dtype.
    """
    batch, dim = x.shape
    dim_a, r = A.shape
    r_b, dim_out = B.shape
    assert dim == dim_a and r == r_b, "shape mismatch"

    itemsize = jnp.dtype(x.dtype).itemsize
    sub_align = _sublane_align(x.dtype)

    a_spec, a_buffers = _resident_a_spec(dim, r)

    cap = _vmem_capacity_bytes()
    budget = int(0.72 * cap)  # headroom for compiler-internal scratch
    tb, tn = _pick_tiles(batch, dim, dim_out, r, itemsize, sub_align,
                         tb_target, tn_target, budget, a_buffers)
    grid = (pl.cdiv(batch, tb), pl.cdiv(dim_out, tn))

    need = _working_set_bytes(tb, tn, dim, r, itemsize, a_buffers)
    vmem_limit = int(min(int(0.9 * cap), max(2 * need, 4 * _MIB)))

    # Post-hoist work: one (batch,dim)@(dim,r) and one (batch,r)@(r,dim_out).
    flops = 2 * batch * r * (dim + dim_out)
    bytes_accessed = (x.size + A.size + B.size + batch * dim_out) * itemsize

    kernel = functools.partial(_lora_kernel, scale=float(scale))
    return pl.pallas_call(
        kernel,
        out_shape=jax.ShapeDtypeStruct((batch, dim_out), x.dtype),
        grid_spec=pltpu.PrefetchScalarGridSpec(
            num_scalar_prefetch=0,
            grid=grid,
            in_specs=[
                # x: block index depends only on i -> re-fetched only on i change.
                pl.BlockSpec((tb, dim), lambda i, j: (i, 0)),
                a_spec,                                      # A: VMEM-resident
                pl.BlockSpec((r, tn), lambda i, j: (0, j)),  # B: streams along j
            ],
            out_specs=pl.BlockSpec((tb, tn), lambda i, j: (i, j)),
            scratch_shapes=[pltpu.VMEM((tb, r), jnp.float32)],  # hoisted (x@A)*scale
        ),
        compiler_params=pltpu.CompilerParams(
            # j carries the xa scratch -> "arbitrary"; i shards across TensorCores.
            dimension_semantics=("parallel", "arbitrary"),
            vmem_limit_bytes=vmem_limit,
        ),
        cost_estimate=pl.CostEstimate(
            flops=flops, transcendentals=0, bytes_accessed=bytes_accessed),
    )(x, A, B)


def lora_reference(x, A, B, *, scale):
    """Pure-JAX reference matching the PyTorch forward (eval mode, no linear)."""
    weight = (A.astype(jnp.float32) @ B.astype(jnp.float32)) * scale
    return x.astype(jnp.float32) @ weight


# --------------------------------------------------------------------------- #
# Demo / smoke test
# --------------------------------------------------------------------------- #
if __name__ == "__main__":
    key = jax.random.PRNGKey(0)
    kx, ka, kb, k2, k3 = jax.random.split(key, 5)

    # ---- Case 1: module defaults at small shapes (r=8, alpha=None -> scale=1.0)
    dim, dim_out, r = 32, 32, 8
    batch = 8
    scale = float(r) / r  # alpha defaults to r -> scale = 1.0

    x = jax.random.normal(kx, (batch, dim), dtype=jnp.float32)
    A = 0.02 * jax.random.normal(ka, (dim, r), dtype=jnp.float32)
    B = 0.02 * jax.random.normal(kb, (r, dim_out), dtype=jnp.float32)

    out = jax.block_until_ready(lora_forward(x, A, B, scale=scale))
    ref = lora_reference(x, A, B, scale=scale)
    assert out.shape == (batch, dim_out)
    assert jnp.allclose(out, ref, atol=1e-5, rtol=1e-4), "mismatch (case 1)"

    # ---- Case 2: tiled path (grid (2, 2)) exercising the hoisted-xa reuse
    dim2, dim_out2, r2 = 128, 256, 8
    batch2 = 256
    scale2 = 16.0 / r2  # alpha=16 -> scale=2.0
    kx2, ka2, kb2 = jax.random.split(k2, 3)
    x2 = jax.random.normal(kx2, (batch2, dim2), dtype=jnp.float32)
    A2 = 0.02 * jax.random.normal(ka2, (dim2, r2), dtype=jnp.float32)
    B2 = 0.02 * jax.random.normal(kb2, (r2, dim_out2), dtype=jnp.float32)

    out2 = jax.block_until_ready(
        lora_forward(x2, A2, B2, scale=scale2, tb_target=128, tn_target=128))
    ref2 = lora_reference(x2, A2, B2, scale=scale2)
    assert out2.shape == (batch2, dim_out2)
    assert jnp.allclose(out2, ref2, atol=1e-5, rtol=1e-4), "mismatch (case 2)"

    # ---- Case 3: bf16 fast path (halved streaming bytes, f32 MXU accumulation)
    dim3, dim_out3, r3 = 64, 128, 8
    batch3 = 64
    scale3 = 16.0 / r3
    kx3, ka3, kb3 = jax.random.split(k3, 3)
    x3 = jax.random.normal(kx3, (batch3, dim3)).astype(jnp.bfloat16)
    A3 = (0.02 * jax.random.normal(ka3, (dim3, r3))).astype(jnp.bfloat16)
    B3 = (0.02 * jax.random.normal(kb3, (r3, dim_out3))).astype(jnp.bfloat16)

    out3 = jax.block_until_ready(lora_forward(x3, A3, B3, scale=scale3))
    ref3 = lora_reference(x3, A3, B3, scale=scale3)
    assert out3.shape == (batch3, dim_out3)
    assert jnp.allclose(out3.astype(jnp.float32), ref3, atol=2e-3, rtol=5e-2), \
        "mismatch (case 3, bf16)"

    print("KERNEL_OK")
</pallas_src>

<mosaic_0001>
module attributes {stable_mosaic.version = 11 : i64} {
  func.func @_probe_kernel(%arg0: i32, %arg1: memref<8x128xf32, #tpu.memory_space<vmem>>, %arg2: memref<8x128xf32, #tpu.memory_space<vmem>>) attributes {dimension_semantics = [#tpu.dimension_semantics<arbitrary>], iteration_bounds = array<i64: 2>, scalar_prefetch = 0 : i64, scratch_operands = 0 : i64, tpu.core_type = #tpu.core_type<tc>, window_params = [{pipeline_mode = #tpu.pipeline_mode<synchronous>, transform_indices = @transform_0, window_bounds = array<i64: 8, 128>}, {transform_indices = @transform_1, window_bounds = array<i64: 8, 128>}]} {
    %c0 = arith.constant 0 : index
    %c0_0 = arith.constant 0 : index
    %0 = vector.load %arg1[%c0, %c0_0] : memref<8x128xf32, #tpu.memory_space<vmem>>, vector<8x128xf32>
    %c0_1 = arith.constant 0 : index
    %c0_2 = arith.constant 0 : index
    %1 = vector.load %arg2[%c0_1, %c0_2] : memref<8x128xf32, #tpu.memory_space<vmem>>, vector<8x128xf32>
    tpu.vector_store %arg2[%c0_1, %c0_2], %0 {strides = array<i32>} : memref<8x128xf32, #tpu.memory_space<vmem>>, vector<8x128xf32>,
    return
  }
  func.func @transform_0(%arg0: i32) -> (i32, i32) {
    %c0_i32 = arith.constant 0 : i32
    %c0_i32_0 = arith.constant 0 : i32
    %c0_i32_1 = arith.constant 0 : i32
    return %c0_i32, %c0_i32_0 : i32, i32
  }
  func.func @transform_1(%arg0: i32) -> (i32, i32) {
    %c0_i32 = arith.constant 0 : i32
    %c0_i32_0 = arith.constant 0 : i32
    return %arg0, %c0_i32 : i32, i32
  }
}

module attributes {stable_mosaic.version = 11 : i64} {
  func.func @_lora_kernel(%arg0: i32, %arg1: i32, %arg2: memref<8x32xf32, #tpu.memory_space<vmem>>, %arg3: memref<32x8xf32, #tpu.memory_space<vmem>>, %arg4: memref<8x32xf32, #tpu.memory_space<vmem>>, %arg5: memref<8x32xf32, #tpu.memory_space<vmem>>, %arg6: memref<8x8xf32, #tpu.memory_space<vmem>>) attributes {dimension_semantics = [#tpu.dimension_semantics<parallel>, #tpu.dimension_semantics<arbitrary>], iteration_bounds = array<i64: 1, 1>, scalar_prefetch = 0 : i64, scratch_operands = 1 : i64, tpu.core_type = #tpu.core_type<tc>, window_params = [{transform_indices = @transform_0, window_bounds = array<i64: 8, 32>}, {pipeline_mode = #tpu.pipeline_mode<synchronous>, transform_indices = @transform_1, window_bounds = array<i64: 32, 8>}, {transform_indices = @transform_2, window_bounds = array<i64: 8, 32>}, {transform_indices = @transform_3, window_bounds = array<i64: 8, 32>}]} {
    %c0_i32 = arith.constant 0 : i32
    %0 = arith.cmpi eq, %arg1, %c0_i32 : i32
    %1 = arith.extui %0 : i1 to i32
    %c0_i32_0 = arith.constant 0 : i32
    %2 = arith.cmpi ne, %1, %c0_i32_0 : i32
    scf.if %2 {
      %c0_6 = arith.constant 0 : index
      %c0_7 = arith.constant 0 : index
      %7 = vector.load %arg2[%c0_6, %c0_7] : memref<8x32xf32, #tpu.memory_space<vmem>>, vector<8x32xf32>
      %c0_8 = arith.constant 0 : index
      %c0_9 = arith.constant 0 : index
      %8 = vector.load %arg3[%c0_8, %c0_9] : memref<32x8xf32, #tpu.memory_space<vmem>>, vector<32x8xf32>
      %cst_10 = arith.constant dense<0.000000e+00> : vector<8x8xf32>
      %9 = tpu.matmul %7, %8, %cst_10 {dimension_numbers = #tpu.dot_dimension_numbers<[1], [0], [0], [1], [0, 0, 1, 1], [], []>} : vector<8x32xf32>, vector<32x8xf32>, vector<8x8xf32> -> vector<8x8xf32>
      %c0_11 = arith.constant 0 : index
      %c0_12 = arith.constant 0 : index
      %10 = vector.load %arg6[%c0_11, %c0_12] : memref<8x8xf32, #tpu.memory_space<vmem>>, vector<8x8xf32>
      tpu.vector_store %arg6[%c0_11, %c0_12], %9 {strides = array<i32>} : memref<8x8xf32, #tpu.memory_space<vmem>>, vector<8x8xf32>,
    } else {
    }
    %c0 = arith.constant 0 : index
    %c0_1 = arith.constant 0 : index
    %3 = vector.load %arg6[%c0, %c0_1] : memref<8x8xf32, #tpu.memory_space<vmem>>, vector<8x8xf32>
    %c0_2 = arith.constant 0 : index
    %c0_3 = arith.constant 0 : index
    %4 = vector.load %arg4[%c0_2, %c0_3] : memref<8x32xf32, #tpu.memory_space<vmem>>, vector<8x32xf32>
    %cst = arith.constant dense<0.000000e+00> : vector<8x32xf32>
    %5 = tpu.matmul %3, %4, %cst {dimension_numbers = #tpu.dot_dimension_numbers<[1], [0], [0], [1], [0, 0, 1, 1], [], []>} : vector<8x8xf32>, vector<8x32xf32>, vector<8x32xf32> -> vector<8x32xf32>
    %c0_4 = arith.constant 0 : index
    %c0_5 = arith.constant 0 : index
    %6 = vector.load %arg5[%c0_4, %c0_5] : memref<8x32xf32, #tpu.memory_space<vmem>>, vector<8x32xf32>
    tpu.vector_store %arg5[%c0_4, %c0_5], %5 {strides = array<i32>} : memref<8x32xf32, #tpu.memory_space<vmem>>, vector<8x32xf32>,
    return
  }
  func.func @transform_0(%arg0: i32, %arg1: i32) -> (i32, i32) {
    %c0_i32 = arith.constant 0 : i32
    %c0_i32_0 = arith.constant 0 : i32
    return %arg0, %c0_i32 : i32, i32
  }
  func.func @transform_1(%arg0: i32, %arg1: i32) -> (i32, i32) {
    %c0_i32 = arith.constant 0 : i32
    %c0_i32_0 = arith.constant 0 : i32
    %c0_i32_1 = arith.constant 0 : i32
    return %c0_i32, %c0_i32_0 : i32, i32
  }
  func.func @transform_2(%arg0: i32, %arg1: i32) -> (i32, i32) {
    %c0_i32 = arith.constant 0 : i32
    %c0_i32_0 = arith.constant 0 : i32
    return %c0_i32, %arg1 : i32, i32
  }
  func.func @transform_3(%arg0: i32, %arg1: i32) -> (i32, i32) {
    %c0_i32 = arith.constant 0 : i32
    return %arg0, %arg1 : i32, i32
  }
}

</mosaic_0001>

<llo_original>
// kernel: tpu_custom_call.1
$region0: #{tpu_custom_call.1}
  #allocation0 [shape = 'u32[]', space=smem, size = 0x4, offset = 0x4, fixed_abs, tag = 'smem constant byte address 0x4 - core index']
  #allocation1 [shape = 'u32[144,128]{1,0:T(1,128)}', space=vmem, size = 0x12000, scoped, tag = 'internal scratch']
  %s0 = inlined_call_operand.hbm [shape: f32[8,128], index: 0, kind: input, shape index: {}]
  %s1 = inlined_call_operand.hbm [shape: f32[16,128], index: 1, kind: output, shape index: {}]
  %s2 = sld [smem:[#allocation0]]
  $region41: #{tpu_custom_call.1} parent=0
    _
  %s4 = ssub.s32 1, %s2
  %s5 = scalar_select 0, %s4, %s2
  $region1: #{tpu_custom_call.1} parent=0
    #allocation2 [shape = 'u8[4096]{0}', space=vmem, size = 0x1000, scoped, tag = 'input window, operand 0, single buffered']
    #allocation3 [shape = 's32[2]{0}', space=sflag, size = 0x8, scoped, tag = 'scoped memory for tpu_custom_call.1']
    #allocation4 [shape = 's32[2]{0}', space=sflag, size = 0x8, scoped, tag = 'scoped memory for tpu_custom_call.1']
    #allocation5 [shape = 'u8[8192]{0}', space=vmem, size = 0x2000, scoped, tag = 'output window, operand 0']
    %6 = vsyncpa [#allocation3], 0
    %7 = vsyncpa [#allocation4], 0
    %s8 = scalar_lea.sflag [#allocation4], 1
    %9 = vsyncpa %s8, 0
    loop: start=0, step=1, limit=4
    $region2: #{tpu_custom_call.1} parent=1 // loop_pre_header
      _
    $region3: #{tpu_custom_call.1} parent=1 // loop_header
      %s11 = sphi 0, %s15
      %p12 = scmp.ge.s32.totalorder %s11, 4
      %s19 = sphi 0, %s19
      %s21 = sphi 0, %s19
      %s22 = sphi 0, %s21
      %s36 = sphi 0, %s22
      %s42 = sphi 0, %s44
      %s45 = sphi 0, %s42
      %s46 = sphi 0, %s45
      %s62 = sphi 0, %s46
    $region4: #{tpu_custom_call.1} parent=1 // loop_header_branch
      %14 = sbr.rel (%p12) target = $region8
    $region5: #{tpu_custom_call.1} parent=1 // loop_body
      %s16 = ssub.s32 %s11, 1
      %s17 = ssub.s32 %s11, 2
      %s18 = sadd.s32 %s11, 1
      %s20 = sadd.s32 %s19, 1
      %p23 = scmp.eq.s32.totalorder %s11, 1
      %p24 = scmp.ne.s32.totalorder %s19, %s21
      %p25 = scmp.eq.s32.totalorder %s11, 0
      %p26 = por %p24, %p25
      %p27 = scmp.ne.s32.totalorder %s19, %s21
      %p28 = scmp.eq.s32.totalorder %s16, 1
      %p29 = por %p27, %p28
      %p30 = scmp.ne.s32.totalorder %s21, %s22
      %p31 = scmp.eq.s32.totalorder %s16, 0
      %p32 = por %p30, %p31
      %p33 = scmp.ne.s32.totalorder %s21, %s22
      %p34 = scmp.eq.s32.totalorder %s17, 1
      %p35 = por %p33, %p34
      %p37 = scmp.ne.s32.totalorder %s22, %s36
      %p38 = scmp.eq.s32.totalorder %s17, 0
      %p39 = por %p37, %p38
      %s40 = ssub.s32 %s11, %s18
      %p41 = scmp.eq.s32.totalorder %s40, 0
      %s43 = sadd.s32 %s42, 1
      %s44 = scalar_select %p41, %s42, %s43
      %p47 = pneg %p41
      %p48 = scmp.eq.s32.totalorder %s11, 1
      %p49 = por %p47, %p48
      %p50 = scmp.ne.s32.totalorder %s42, %s45
      %p51 = scmp.eq.s32.totalorder %s11, 0
      %p52 = por %p50, %p51
      %p53 = scmp.ne.s32.totalorder %s42, %s45
      %p54 = scmp.eq.s32.totalorder %s16, 1
      %p55 = por %p53, %p54
      %p56 = scmp.ne.s32.totalorder %s45, %s46
      %p57 = scmp.eq.s32.totalorder %s16, 0
      %p58 = por %p56, %p57
      %p59 = scmp.ne.s32.totalorder %s45, %s46
      %p60 = scmp.eq.s32.totalorder %s17, 1
      %p61 = por %p59, %p60
      %p63 = scmp.ne.s32.totalorder %s46, %s62
      %p64 = scmp.eq.s32.totalorder %s17, 0
      %p65 = por %p63, %p64
      %p66 = scmp.le.s32.totalorder 1, %s11
      %p67 = scmp.lt.s32.totalorder %s11, 3
      %p68 = pnand %p66, %p67
      %p69 = pneg %p68
      // Predicated region
      $region9: #{tpu_custom_call.1} parent=5 // pred_check
        _
      $region10: #{tpu_custom_call.1} parent=5 // pred_check_branch
        %71 = sbr.rel (%p68) target = $region12
      $region11: #{tpu_custom_call.1} parent=5 // pred_region
        %s72 = ssub.s32 %s11, 1
        // Predicated region
        $region13: #{tpu_custom_call.1} parent=11 // pred_check
          %p73 = pneg %p32
        $region14: #{tpu_custom_call.1} parent=11 // pred_check_branch
          %75 = sbr.rel (%p73) target = $region16
        $region15: #{tpu_custom_call.1} parent=11 // pred_region
          %s77 = ssub.s32 128, 128
          %78 = vsyncadd [#allocation3], %s77
          %s80 = sshll.u32 [#allocation2], 4
          %s81 = int_to_ptr.vmem [resolvable:$true] %s80
          %83 = dma.hbm_to_vmem [thread:$0]  %s0, 128, %s81, [#allocation3]
        $region16: #{tpu_custom_call.1} parent=11 // pred_fallthru
          _
      $region12: #{tpu_custom_call.1} parent=5 // pred_fallthru
        _
      %p84 = scmp.lt.s32.totalorder %s11, 2
      // Predicated region
      $region17: #{tpu_custom_call.1} parent=5 // pred_check
        %p85 = pneg %p84
      $region18: #{tpu_custom_call.1} parent=5 // pred_check_branch
        %87 = sbr.rel (%p85) target = $region20
      $region19: #{tpu_custom_call.1} parent=5 // pred_region
        _
      $region20: #{tpu_custom_call.1} parent=5 // pred_fallthru
        _
      %p88 = scmp.le.s32.totalorder 1, %s11
      %p89 = scmp.lt.s32.totalorder %s11, 3
      %p90 = pnand %p88, %p89
      %p91 = pneg %p90
      // Predicated region
      $region21: #{tpu_custom_call.1} parent=5 // pred_check
        _
      $region22: #{tpu_custom_call.1} parent=5 // pred_check_branch
        %93 = sbr.rel (%p90) target = $region24
      $region23: #{tpu_custom_call.1} parent=5 // pred_region
        %s94 = ssub.s32 %s11, 1
        // Predicated region
        $region25: #{tpu_custom_call.1} parent=23 // pred_check
          %p95 = pneg %p32
        $region26: #{tpu_custom_call.1} parent=23 // pred_check_branch
          %97 = sbr.rel (%p95) target = $region28
        $region27: #{tpu_custom_call.1} parent=23 // pred_region
          %98 = dma.done [#allocation3], 128
        $region28: #{tpu_custom_call.1} parent=23 // pred_fallthru
          _
        %p99 = pneg %p32
        %p100 = pneg %p29
        %p101 = pneg %p58
        %p102 = pneg %p55
        %s103 = sand.u32 %s45, 1
        %s104 = scalar_lea.sflag [#allocation4], %s103
        %s105 = sand.u32 %s45, 1
        %s106 = smul.addr %s105, 8
        %s107 = scalar_lea.vmem [#allocation5], %s106
        %v108 = vld [vmem:[#allocation2] sm:$0xff]
        %109 = vst [vmem:[%s107] sm:$0xff] %v108
        %s110 = sand.u32 %s45, 1
        %s111 = scalar_lea.sflag [#allocation4], %s110
        %s112 = sand.u32 %s45, 1
        %s113 = smul.addr %s112, 8
        %s114 = scalar_lea.vmem [#allocation5], %s113
        // Predicated region
        $region29: #{tpu_custom_call.1} parent=23 // pred_check
          %p115 = pneg %p55
        $region30: #{tpu_custom_call.1} parent=23 // pred_check_branch
          %117 = sbr.rel (%p115) target = $region32
        $region31: #{tpu_custom_call.1} parent=23 // pred_region
          %s119 = ssub.s32 128, 128
          %120 = vsyncadd %s111, %s119
          %s121 = smul.addr %s16, 128
          %s122 = scalar_lea.hbm %s1, %s121
          %s124 = sshll.u32 %s114, 4
          %s125 = int_to_ptr.vmem [resolvable:$true] %s124
          %127 = dma.vmem_to_hbm [thread:$0]  %s125, 128, %s122, %s111
        $region32: #{tpu_custom_call.1} parent=23 // pred_fallthru
          _
      $region24: #{tpu_custom_call.1} parent=5 // pred_fallthru
        _
      %p128 = scmp.le.s32.totalorder 2, %s11
      // Predicated region
      $region33: #{tpu_custom_call.1} parent=5 // pred_check
        %p129 = pneg %p128
      $region34: #{tpu_custom_call.1} parent=5 // pred_check_branch
        %131 = sbr.rel (%p129) target = $region36
      $region35: #{tpu_custom_call.1} parent=5 // pred_region
        %s132 = ssub.s32 %s11, 2
        // Predicated region
        $region37: #{tpu_custom_call.1} parent=35 // pred_check
          %p133 = pneg %p61
        $region38: #{tpu_custom_call.1} parent=35 // pred_check_branch
          %135 = sbr.rel (%p133) target = $region40
        $region39: #{tpu_custom_call.1} parent=35 // pred_region
          %s136 = sand.u32 %s46, 1
          %s137 = scalar_lea.sflag [#allocation4], %s136
          %s138 = sand.u32 %s46, 1
          %s139 = smul.addr %s138, 8
          %s140 = scalar_lea.vmem [#allocation5], %s139
          %141 = dma.done %s137, 128
        $region40: #{tpu_custom_call.1} parent=35 // pred_fallthru
          _
      $region36: #{tpu_custom_call.1} parent=5 // pred_fallthru
        _
    $region6: #{tpu_custom_call.1} parent=1 // loop_footer
      %s15 = sadd.s32 1, %s11
    $region7: #{tpu_custom_call.1} parent=1 // loop_footer_branch
      %10 = sbr.rel target = $region3
    $region8: #{tpu_custom_call.1} parent=1 // loop_exit
      _
    %142 = vsyncpa [#allocation3], 1
    %s143 = scalar_lea.sflag [#allocation3], 1
    %144 = vsyncpa %s143, 1
    %145 = vsyncpa [#allocation4], 1
    %s146 = scalar_lea.sflag [#allocation4], 1
    %147 = vsyncpa %s146, 1

// kernel: tpu_custom_call.1
$region0: #{tpu_custom_call.1}
  #allocation0 [shape = 'u32[]', space=smem, size = 0x4, offset = 0x4, fixed_abs, tag = 'smem constant byte address 0x4 - core index']
  #allocation1 [shape = 'u32[144,128]{1,0:T(1,128)}', space=vmem, size = 0x12000, scoped, tag = 'internal scratch']
  #allocation2 [shape = 'f32[8,8]{1,0:T(8,128)}', space=vmem, size = 0x1000, scoped, tag = 'scratch operand']
  %s0 = inlined_call_operand.vmem [shape: f32[8,32], index: 0, kind: input, shape index: {}]
  %s1 = inlined_call_operand.vmem [shape: f32[32,8], index: 1, kind: input, shape index: {}]
  %s2 = inlined_call_operand.vmem [shape: f32[8,32], index: 2, kind: input, shape index: {}]
  %s3 = inlined_call_operand.hbm [shape: f32[8,32], index: 3, kind: output, shape index: {}]
  %s4 = sld [smem:[#allocation0]]
  $region26: #{tpu_custom_call.1} parent=0
    _
  %s6 = ssub.s32 1, %s4
  %s7 = scalar_select 0, %s6, %s4
  $region1: #{tpu_custom_call.1} parent=0
    #allocation3 [shape = 'u8[4096]{0}', space=vmem, size = 0x1000, scoped, tag = 'output window, operand 0, single buffered']
    #allocation4 [shape = 's32[1]{0}', space=sflag, size = 0x4, scoped, tag = 'scoped memory for tpu_custom_call.1']
    %8 = vsyncpa [#allocation4], 0
    // Predicated region
    $region2: #{tpu_custom_call.1} parent=1 // pred_check
      _
    $region3: #{tpu_custom_call.1} parent=1 // pred_check_branch
      %10 = sbr.rel (0) target = $region5
    $region4: #{tpu_custom_call.1} parent=1 // pred_region
      _
    $region5: #{tpu_custom_call.1} parent=1 // pred_fallthru
      _
    // Predicated region
    $region6: #{tpu_custom_call.1} parent=1 // pred_check
      _
    $region7: #{tpu_custom_call.1} parent=1 // pred_check_branch
      %12 = sbr.rel (0) target = $region9
    $region8: #{tpu_custom_call.1} parent=1 // pred_region
      _
    $region9: #{tpu_custom_call.1} parent=1 // pred_fallthru
      _
    // Predicated region
    $region10: #{tpu_custom_call.1} parent=1 // pred_check
      _
    $region11: #{tpu_custom_call.1} parent=1 // pred_check_branch
      %14 = sbr.rel (0) target = $region13
    $region12: #{tpu_custom_call.1} parent=1 // pred_region
      _
    $region13: #{tpu_custom_call.1} parent=1 // pred_fallthru
      _
    %p15 = scmp.eq.s32.totalorder 0, 0
    // Predicated region
    $region14: #{tpu_custom_call.1} parent=1 // pred_check
      %p16 = pneg %p15
    $region15: #{tpu_custom_call.1} parent=1 // pred_check_branch
      %18 = sbr.rel (%p16) target = $region17
    $region16: #{tpu_custom_call.1} parent=1 // pred_region
      %v19 = vld [vmem:[%s0] sm:$0xff]
      %v20 = vld [vmem:[%s1] sm:$0xff]
      %v21 = vld [vmem:[%s1 + $0x8] sm:$0xff]
      %v22 = vld [vmem:[%s1 + $0x10] sm:$0xff]
      %v23 = vld [vmem:[%s1 + $0x18] sm:$0xff]
      %vm24 = vcmask 261120
      %v26 = vsel %vm24, %v19, 0
      %28 = vmatprep.subr.mxu0 0.0
      %29 = vmatpush1.msra.mxu0 %v20
      %30 = vmatprep.subr.mxu0 0.0
      %31 = vmatpush1.msra.mxu0 %v21
      %32 = vmatprep.subr.mxu0 0.0
      %33 = vmatpush1.msra.mxu0 %v22
      %34 = vmatprep.subr.mxu0 0.0
      %35 = vmatpush1.msra.mxu0 %v23
      %36 = vmatprep.subr.mxu0 0.0
      %37 = vmatpush1.msra.mxu0 0.0
      %38 = vmatprep.subr.mxu0 0.0
      %39 = vmatpush1.msra.mxu0 0.0
      %40 = vmatprep.subr.mxu0 0.0
      %41 = vmatpush1.msra.mxu0 0.0
      %42 = vmatprep.subr.mxu0 0.0
      %43 = vmatpush1.msra.mxu0 0.0
      %44 = vmatprep.subr.mxu0 0.0
      %45 = vmatpush1.msra.mxu0 0.0
      %46 = vmatprep.subr.mxu0 0.0
      %47 = vmatpush1.msra.mxu0 0.0
      %48 = vmatprep.subr.mxu0 0.0
      %49 = vmatpush1.msra.mxu0 0.0
      %50 = vmatprep.subr.mxu0 0.0
      %51 = vmatpush1.msra.mxu0 0.0
      %52 = vmatprep.subr.mxu0 0.0
      %53 = vmatpush1.msra.mxu0 0.0
      %54 = vmatprep.subr.mxu0 0.0
      %55 = vmatpush1.msra.mxu0 0.0
      %56 = vmatprep.subr.mxu0 0.0
      %57 = vmatpush1.msra.mxu0 0.0
      %58 = vmatprep.subr.mxu0 0.0
      %59 = vmatpush1.msra.mxu0 0.0
      %60 = vmatprep.subr.mxu0 0.0
      %61 = vmatpush1.msra.mxu0 0.0
      %62 = vmatprep.subr.mxu0 0.0
      %63 = vmatpush1.msra.mxu0 0.0
      %64 = vmatprep.subr.mxu0 0.0
      %65 = vmatpush1.msra.mxu0 0.0
      %66 = vmatprep.subr.mxu0 0.0
      %67 = vmatpush1.msra.mxu0 0.0
      %68 = vmatprep.subr.mxu0 0.0
      %69 = vmatpush1.msra.mxu0 0.0
      %70 = vmatprep.subr.mxu0 0.0
      %71 = vmatpush1.msra.mxu0 0.0
      %72 = vmatprep.subr.mxu0 0.0
      %73 = vmatpush1.msra.mxu0 0.0
      %74 = vmatprep.subr.mxu0 0.0
      %75 = vmatpush1.msra.mxu0 0.0
      %76 = vmatprep.subr.mxu0 0.0
      %77 = vmatpush1.msra.mxu0 0.0
      %78 = vmatprep.subr.mxu0 0.0
      %79 = vmatpush1.msra.mxu0 0.0
      %80 = vmatprep.subr.mxu0 0.0
      %81 = vmatpush1.msra.mxu0 0.0
      %82 = vmatprep.subr.mxu0 0.0
      %83 = vmatpush1.msra.mxu0 0.0
      %84 = vmatprep.subr.mxu0 0.0
      %85 = vmatpush1.msra.mxu0 0.0
      %86 = vmatprep.subr.mxu0 0.0
      %87 = vmatpush1.msra.mxu0 0.0
      %88 = vmatprep.subr.mxu0 0.0
      %89 = vmatpush1.msra.mxu0 0.0
      %90 = vmatprep.subr.mxu0 0.0
      %91 = vmatpush1.msra.mxu0 0.0
      %92 = vmatprep.mubr.f32.mxu0 0.0
      %93 = vmatmul.mubr.f32.gmra.mrb[0].mxu0 %v26
      %v94 = vpop.f32.mrb[0].mxu0
      %v95 = vadd.f32 0.0, %v94
      %v96 = vpop.f32.mrb[0].mxu0
      %97 = vdwg.mxu0
      %vm98 = vcmask 64512
      %99 = vst.msk [vmem:[#allocation2] sm:$0xff] %vm98, %v95
    $region17: #{tpu_custom_call.1} parent=1 // pred_fallthru
      _
    %v100 = vld [vmem:[#allocation2] sm:$0xff]
    %v101 = vld [vmem:[%s2] sm:$0xff]
    %vm102 = vcmask 64512
    %v104 = vsel %vm102, %v100, 0
    %106 = vmatprep.subr.mxu0 0.0
    %107 = vmatpush1.msra.mxu0 %v101
    %108 = vmatprep.subr.mxu0 0.0
    %109 = vmatpush1.msra.mxu0 0.0
    %110 = vmatprep.subr.mxu0 0.0
    %111 = vmatpush1.msra.mxu0 0.0
    %112 = vmatprep.subr.mxu0 0.0
    %113 = vmatpush1.msra.mxu0 0.0
    %114 = vmatprep.subr.mxu0 0.0
    %115 = vmatpush1.msra.mxu0 0.0
    %116 = vmatprep.subr.mxu0 0.0
    %117 = vmatpush1.msra.mxu0 0.0
    %118 = vmatprep.subr.mxu0 0.0
    %119 = vmatpush1.msra.mxu0 0.0
    %120 = vmatprep.subr.mxu0 0.0
    %121 = vmatpush1.msra.mxu0 0.0
    %122 = vmatprep.subr.mxu0 0.0
    %123 = vmatpush1.msra.mxu0 0.0
    %124 = vmatprep.subr.mxu0 0.0
    %125 = vmatpush1.msra.mxu0 0.0
    %126 = vmatprep.subr.mxu0 0.0
    %127 = vmatpush1.msra.mxu0 0.0
    %128 = vmatprep.subr.mxu0 0.0
    %129 = vmatpush1.msra.mxu0 0.0
    %130 = vmatprep.subr.mxu0 0.0
    %131 = vmatpush1.msra.mxu0 0.0
    %132 = vmatprep.subr.mxu0 0.0
    %133 = vmatpush1.msra.mxu0 0.0
    %134 = vmatprep.subr.mxu0 0.0
    %135 = vmatpush1.msra.mxu0 0.0
    %136 = vmatprep.subr.mxu0 0.0
    %137 = vmatpush1.msra.mxu0 0.0
    %138 = vmatprep.subr.mxu0 0.0
    %139 = vmatpush1.msra.mxu0 0.0
    %140 = vmatprep.subr.mxu0 0.0
    %141 = vmatpush1.msra.mxu0 0.0
    %142 = vmatprep.subr.mxu0 0.0
    %143 = vmatpush1.msra.mxu0 0.0
    %144 = vmatprep.subr.mxu0 0.0
    %145 = vmatpush1.msra.mxu0 0.0
    %146 = vmatprep.subr.mxu0 0.0
    %147 = vmatpush1.msra.mxu0 0.0
    %148 = vmatprep.subr.mxu0 0.0
    %149 = vmatpush1.msra.mxu0 0.0
    %150 = vmatprep.subr.mxu0 0.0
    %151 = vmatpush1.msra.mxu0 0.0
    %152 = vmatprep.subr.mxu0 0.0
    %153 = vmatpush1.msra.mxu0 0.0
    %154 = vmatprep.subr.mxu0 0.0
    %155 = vmatpush1.msra.mxu0 0.0
    %156 = vmatprep.subr.mxu0 0.0
    %157 = vmatpush1.msra.mxu0 0.0
    %158 = vmatprep.subr.mxu0 0.0
    %159 = vmatpush1.msra.mxu0 0.0
    %160 = vmatprep.subr.mxu0 0.0
    %161 = vmatpush1.msra.mxu0 0.0
    %162 = vmatprep.subr.mxu0 0.0
    %163 = vmatpush1.msra.mxu0 0.0
    %164 = vmatprep.subr.mxu0 0.0
    %165 = vmatpush1.msra.mxu0 0.0
    %166 = vmatprep.subr.mxu0 0.0
    %167 = vmatpush1.msra.mxu0 0.0
    %168 = vmatprep.subr.mxu0 0.0
    %169 = vmatpush1.msra.mxu0 0.0
    %170 = vmatprep.mubr.f32.mxu0 0.0
    %171 = vmatmul.mubr.f32.gmra.mrb[0].mxu0 %v104
    %v172 = vpop.f32.mrb[0].mxu0
    %v173 = vadd.f32 0.0, %v172
    %v174 = vpop.f32.mrb[0].mxu0
    %175 = vdwg.mxu0
    %vm176 = vcmask 261120
    %177 = vst.msk [vmem:[#allocation3] sm:$0xff] %vm176, %v173
    // Predicated region
    $region18: #{tpu_custom_call.1} parent=1 // pred_check
      _
    $region19: #{tpu_custom_call.1} parent=1 // pred_check_branch
      %179 = sbr.rel (0) target = $region21
    $region20: #{tpu_custom_call.1} parent=1 // pred_region
      %s181 = ssub.s32 128, 128
      %182 = vsyncadd [#allocation4], %s181
      %s184 = sshll.u32 [#allocation3], 4
      %s185 = int_to_ptr.vmem [resolvable:$true] %s184
      %187 = dma.vmem_to_hbm [thread:$0]  %s185, 128, %s3, [#allocation4]
    $region21: #{tpu_custom_call.1} parent=1 // pred_fallthru
      _
    // Predicated region
    $region22: #{tpu_custom_call.1} parent=1 // pred_check
      _
    $region23: #{tpu_custom_call.1} parent=1 // pred_check_branch
      %189 = sbr.rel (0) target = $region25
    $region24: #{tpu_custom_call.1} parent=1 // pred_region
      %190 = dma.done [#allocation4], 128
    $region25: #{tpu_custom_call.1} parent=1 // pred_fallthru
      _
    %191 = vsyncpa [#allocation4], 1

</llo_original>
